<compile_context>
chip_gen: v6e
topology: v6e:2x2x1
jax: 0.10.0
libtpu: 0.0.40
codegen_flags: <defaults>
</compile_context>

<pallas_src>
import functools
import math

import jax
import jax.numpy as jnp
from jax.experimental import pallas as pl
from jax.experimental.pallas import tpu as pltpu

_LANES = 128
_SUBLANES = 8
_MASK_ROW_ALIGN = 32          # int8 native tiling is (32, 128)
_MAX_BLOCK_ROWS = 4096        # (4096, 128) f32 = 2 MiB per input per buffer


def _num_tensorcore_splits() -> int:
    """2 on multi-TensorCore chips (v7x), else 1 (v5e / v6e single TC)."""
    try:
        kind = str(getattr(jax.devices()[0], "device_kind", "")).lower()
    except Exception:
        return 1
    if "v7" in kind or "7x" in kind or "tpu7" in kind:
        return 2
    return 1


def _resize_bilinear_align_corners(x, size):
    """(B, C, H, W) float -> (B, C, Ho, Wo); F.interpolate bilinear, align_corners=True."""
    _, _, H, W = x.shape
    Ho, Wo = size
    if (H, W) == (Ho, Wo):
        return x

    def coords(n_in, n_out):
        if n_out <= 1 or n_in <= 1:
            return jnp.zeros((n_out,), jnp.float32)
        return jnp.arange(n_out, dtype=jnp.float32) * ((n_in - 1) / (n_out - 1))

    yc, xc = coords(H, Ho), coords(W, Wo)
    y0 = jnp.clip(jnp.floor(yc).astype(jnp.int32), 0, max(H - 1, 0))
    y1 = jnp.minimum(y0 + 1, H - 1)
    x0 = jnp.clip(jnp.floor(xc).astype(jnp.int32), 0, max(W - 1, 0))
    x1 = jnp.minimum(x0 + 1, W - 1)
    wy = (yc - y0.astype(jnp.float32))[None, None, :, None]
    wx = (xc - x0.astype(jnp.float32))[None, None, None, :]
    top, bot = x[:, :, y0, :], x[:, :, y1, :]
    v = top * (1.0 - wy) + bot * wy
    return v[:, :, :, x0] * (1.0 - wx) + v[:, :, :, x1] * wx


def _resize_nearest(x, size):
    """(B, C, H, W) float -> (B, C, Ho, Wo); F.interpolate mode='nearest'."""
    _, _, H, W = x.shape
    Ho, Wo = size
    if (H, W) == (Ho, Wo):
        return x
    yi = jnp.clip(jnp.floor(jnp.arange(Ho, dtype=jnp.float32) * (H / Ho)).astype(jnp.int32), 0, H - 1)
    xi = jnp.clip(jnp.floor(jnp.arange(Wo, dtype=jnp.float32) * (W / Wo)).astype(jnp.int32), 0, W - 1)
    return x[:, :, yi, :][:, :, :, xi]


def _silog_partials_kernel(*refs, eps, block_rows, n_total, per_core, has_mask):
    """Accumulates (8,128) vector partial sums of (count, d, d*d), d = log(x/y)."""
    if has_mask:
        inp_ref, tgt_ref, msk_ref, out_ref = refs
    else:
        inp_ref, tgt_ref, out_ref = refs
        msk_ref = None

    c = pl.program_id(0)          # core-split index
    i = pl.program_id(1)          # reduction step ("arbitrary")

    @pl.when(i == 0)
    def _init():
        out_ref[...] = jnp.zeros_like(out_ref)

    b = c * per_core + i                      # global (unclamped) block index
    block_elems = block_rows * _LANES
    g = block_rows // _SUBLANES
    o = 1 if has_mask else 0

    def log_ratio():
        x = jnp.maximum(inp_ref[...], eps)    # clamp(min=eps)
        y = jnp.maximum(tgt_ref[...], eps)
        # One EUP log per element (plus a cheap divide) instead of two logs.
        return jnp.log(x / y)

    def accumulate(d, valid_f32):
        if has_mask:
            out_ref[0, 0] += jnp.sum(valid_f32.reshape(g, _SUBLANES, _LANES), axis=0)
        out_ref[0, o] += jnp.sum(d.reshape(g, _SUBLANES, _LANES), axis=0)
        out_ref[0, o + 1] += jnp.sum((d * d).reshape(g, _SUBLANES, _LANES), axis=0)

    # Fast path: every element of this block is a real pixel -> no iota/compare.
    is_full = (b + 1) * block_elems <= n_total

    @pl.when(is_full)
    def _full_block():
        d = log_ratio()
        if has_mask:
            valid = msk_ref[...] != 0
            accumulate(jnp.where(valid, d, 0.0), valid.astype(jnp.float32))
        else:
            accumulate(d, None)

    # Slow path: ragged tail block / redundant core-split step -> element mask.
    @pl.when(jnp.logical_not(is_full))
    def _partial_block():
        elem = (b * block_elems
                + jax.lax.broadcasted_iota(jnp.int32, (block_rows, _LANES), 0) * _LANES
                + jax.lax.broadcasted_iota(jnp.int32, (block_rows, _LANES), 1))
        valid = elem < n_total
        if has_mask:
            valid = jnp.logical_and(valid, msk_ref[...] != 0)
        # jnp.where (select), so garbage from the ragged DMA can't poison sums.
        d = jnp.where(valid, log_ratio(), 0.0)
        accumulate(d, valid.astype(jnp.float32) if has_mask else None)


def silog_loss(input_depth, target_depth, mask=None, variance_focus: float = 0.85,
               interpolate: bool = True, eps: float = 1e-7,
               block_rows=None, num_core_splits=None):
    """Scale-invariant log loss; returns a scalar float32.

    input_depth / target_depth: (B, 1, H, W) or (B, H, W) arrays.
    mask: optional boolean array (True = valid), broadcastable to input_depth.
    """
    inp = jnp.asarray(input_depth, jnp.float32)
    tgt = jnp.asarray(target_depth, jnp.float32)
    if inp.ndim == 3:
        inp = inp[:, None]
    if tgt.ndim == 3:
        tgt = tgt[:, None]
    if interpolate and inp.shape[-2:] != tgt.shape[-2:]:
        inp = _resize_bilinear_align_corners(inp, tgt.shape[-2:])
    assert inp.shape[-2:] == tgt.shape[-2:], "spatial dims of input/target must match"

    shape = jnp.broadcast_shapes(inp.shape, tgt.shape)
    inp = jnp.broadcast_to(inp, shape)
    tgt = jnp.broadcast_to(tgt, shape)

    has_mask = mask is not None
    if has_mask:
        m = jnp.asarray(mask)
        if m.ndim == 3:
            m = m[:, None]
        if m.shape[-2:] != shape[-2:]:
            m = _resize_nearest(m.astype(jnp.float32), shape[-2:]) > 0.5
        # TODO(synk): streaming the bool array directly would drop this 1 B/elem
        # astype copy; int8 kept for Mosaic layout safety.
        m = jnp.broadcast_to(m, shape).astype(jnp.int8)

    n_total = math.prod(shape)
    if n_total == 0:
        return jnp.float32(0.0)

    blk_align = _MASK_ROW_ALIGN if has_mask else _SUBLANES
    rows = pl.cdiv(n_total, _LANES)
    # f32 streams: only copy-pad when unavoidable (reshape to (rows,128) needs a
    # multiple of 1024 elements / at least one aligned block); ragged tails are
    # otherwise handled by the in-kernel element mask.
    rows_arr = max(pl.cdiv(rows, _SUBLANES) * _SUBLANES, blk_align)
    flat_i = inp.reshape(-1)
    flat_t = tgt.reshape(-1)
    pad_f = rows_arr * _LANES - n_total
    if pad_f:
        flat_i = jnp.pad(flat_i, (0, pad_f), constant_values=1.0)
        flat_t = jnp.pad(flat_t, (0, pad_f), constant_values=1.0)
    operands = [flat_i.reshape(rows_arr, _LANES), flat_t.reshape(rows_arr, _LANES)]

    if block_rows is None:
        block_rows = _MAX_BLOCK_ROWS
    block_rows = max(blk_align, (int(block_rows) // blk_align) * blk_align)
    block_rows = min(block_rows, (rows_arr // blk_align) * blk_align)
    nblocks = pl.cdiv(rows_arr, block_rows)

    mask_bytes = 0
    if has_mask:
        # Pad the cheap 1 B/elem mask independently so its ragged blocks stay
        # 32-row aligned; the 4-byte streams are NOT padded for the mask.
        rows_m = pl.cdiv(rows_arr, _MASK_ROW_ALIGN) * _MASK_ROW_ALIGN
        flat_m = m.reshape(-1)
        pad_m = rows_m * _LANES - n_total
        if pad_m:
            flat_m = jnp.pad(flat_m, (0, pad_m), constant_values=0)
        operands.append(flat_m.reshape(rows_m, _LANES))
        mask_bytes = rows_m * _LANES

    num_splits = (_num_tensorcore_splits() if num_core_splits is None
                  else max(1, int(num_core_splits)))
    num_splits = min(num_splits, nblocks)
    per_core = pl.cdiv(nblocks, num_splits)
    grid = (num_splits, per_core)

    def in_map(c, i):
        # Clamp so a redundant final core-split step never addresses past the
        # array; its contribution is zeroed in-kernel by the element mask.
        return (jnp.minimum(c * per_core + i, nblocks - 1), 0)

    n_out = 3 if has_mask else 2
    kernel = functools.partial(
        _silog_partials_kernel, eps=float(eps), block_rows=block_rows,
        n_total=n_total, per_core=per_core, has_mask=has_mask)

    bytes_accessed = (rows_arr * _LANES * 8 + mask_bytes
                      + num_splits * n_out * _SUBLANES * _LANES * 4)
    cost = pl.CostEstimate(flops=8 * rows_arr * _LANES,
                           transcendentals=2 * rows_arr * _LANES,
                           bytes_accessed=bytes_accessed)

    if num_splits > 1:
        # Only CORE_PARALLEL reliably shards a grid axis across TensorCores (v7x).
        dim_sem = (getattr(pltpu, "CORE_PARALLEL", "parallel"),
                   getattr(pltpu, "ARBITRARY", "arbitrary"))
    else:
        dim_sem = ("arbitrary", "arbitrary")

    partials = pl.pallas_call(
        kernel,
        out_shape=jax.ShapeDtypeStruct(
            (num_splits, n_out, _SUBLANES, _LANES), jnp.float32),
        grid_spec=pltpu.PrefetchScalarGridSpec(
            num_scalar_prefetch=0,
            grid=grid,
            in_specs=[pl.BlockSpec((block_rows, _LANES), in_map)
                      for _ in operands],
            out_specs=pl.BlockSpec((1, n_out, _SUBLANES, _LANES),
                                   lambda c, i: (c, 0, 0, 0)),
        ),
        compiler_params=pltpu.CompilerParams(dimension_semantics=dim_sem),
        cost_estimate=cost,
    )(*operands)

    if has_mask:
        cnt = jnp.sum(partials[:, 0])
        s1 = jnp.sum(partials[:, 1])
        s2 = jnp.sum(partials[:, 2])
    else:
        cnt = jnp.asarray(n_total, jnp.float32)   # every pixel is valid
        s1 = jnp.sum(partials[:, 0])
        s2 = jnp.sum(partials[:, 1])

    # O(1) scalar finalize in plain JAX (torch.var default is unbiased, n-1).
    # TODO(synk): f32 (s2 - s1^2/n) can cancel for large systematic log offsets;
    # a compensated / f64 finalize would need x64 enabled.
    n_safe = jnp.maximum(cnt, 1.0)
    mean = s1 / n_safe
    var = (s2 - s1 * s1 / n_safe) / jnp.maximum(cnt - 1.0, 1.0)
    var = jnp.where(cnt < 2.0, 0.0, var)
    d_g = var + (1.0 - variance_focus) * mean * mean
    loss = 10.0 * jnp.sqrt(jnp.maximum(d_g, eps))   # torch.clamp(d_g, min=eps)
    return jnp.where(cnt < 1.0, jnp.float32(0.0), loss)


def _silog_ref(inp, tgt, mask=None, variance_focus=0.85, interpolate=True, eps=1e-7):
    """Pure-JAX reference mirroring the PyTorch forward."""
    inp = jnp.asarray(inp, jnp.float32)
    tgt = jnp.asarray(tgt, jnp.float32)
    if inp.ndim == 3:
        inp = inp[:, None]
    if tgt.ndim == 3:
        tgt = tgt[:, None]
    if interpolate and inp.shape[-2:] != tgt.shape[-2:]:
        inp = _resize_bilinear_align_corners(inp, tgt.shape[-2:])
    shape = jnp.broadcast_shapes(inp.shape, tgt.shape)
    inp = jnp.broadcast_to(inp, shape)
    tgt = jnp.broadcast_to(tgt, shape)
    if mask is None:
        m = jnp.ones(shape, jnp.float32)
    else:
        mm = jnp.asarray(mask)
        if mm.ndim == 3:
            mm = mm[:, None]
        if mm.shape[-2:] != shape[-2:]:
            mm = _resize_nearest(mm.astype(jnp.float32), shape[-2:]) > 0.5
        m = jnp.broadcast_to(mm, shape).astype(jnp.float32)
    inp, tgt, m = inp.reshape(-1), tgt.reshape(-1), m.reshape(-1)
    d = jnp.where(m > 0,
                  jnp.log(jnp.maximum(inp, eps)) - jnp.log(jnp.maximum(tgt, eps)),
                  0.0)
    n = jnp.sum(m)
    s1, s2 = jnp.sum(d), jnp.sum(d * d)
    n_safe = jnp.maximum(n, 1.0)
    mean = s1 / n_safe
    var = (s2 - s1 * s1 / n_safe) / jnp.maximum(n - 1.0, 1.0)
    var = jnp.where(n < 2.0, 0.0, var)
    d_g = var + (1.0 - variance_focus) * mean * mean
    return jnp.where(n < 1.0, 0.0, 10.0 * jnp.sqrt(jnp.maximum(d_g, eps)))


if __name__ == "__main__":
    def check(pred, gt, mask=None, block_rows=None, label=""):
        got = jax.block_until_ready(silog_loss(pred, gt, mask=mask,
                                               block_rows=block_rows))
        want = _silog_ref(pred, gt, mask)
        tol = 2e-3 * max(1.0, abs(float(want)))
        assert abs(float(got) - float(want)) < tol, (label, float(got), float(want))

    ks = jax.random.split(jax.random.PRNGKey(0), 12)

    # 1) Small map: exercises the residual host pad + single-block grid.
    B, C, H, W = 2, 1, 16, 16
    pred = jax.random.uniform(ks[0], (B, C, H, W), jnp.float32, 0.1, 10.0)
    gt = jax.random.uniform(ks[1], (B, C, H, W), jnp.float32, 0.1, 10.0)
    mask = jax.random.uniform(ks[2], (B, C, H, W)) > 0.3
    check(pred, gt, None, label="small/nomask")
    check(pred, gt, mask, label="small/mask")

    # 2) Ragged rows vs block size: multi-step reduction, ragged last f32 block,
    #    independently padded int8 mask (f32 streams are NOT host-padded here).
    B, C, H, W = 2, 1, 40, 64
    pred2 = jax.random.uniform(ks[3], (B, C, H, W), jnp.float32, 0.05, 20.0)
    gt2 = jax.random.uniform(ks[4], (B, C, H, W), jnp.float32, 0.05, 20.0)
    mask2 = jax.random.uniform(ks[5], (B, C, H, W)) > 0.5
    check(pred2, gt2, None, block_rows=16, label="ragged/nomask")
    check(pred2, gt2, mask2, block_rows=32, label="ragged/mask")

    # 3) Aligned multi-block case exercising the fully-valid fast path.
    B, C, H, W = 2, 1, 128, 128
    pred3 = jax.random.uniform(ks[6], (B, C, H, W), jnp.float32, 0.1, 80.0)
    gt3 = jax.random.uniform(ks[7], (B, C, H, W), jnp.float32, 0.1, 80.0)
    mask3 = jax.random.uniform(ks[8], (B, C, H, W)) > 0.2
    check(pred3, gt3, None, block_rows=64, label="multi/nomask")
    check(pred3, gt3, mask3, block_rows=64, label="multi/mask")
    check(pred3, gt3, None, label="default-block/nomask")

    # 4) All-invalid mask -> loss must be exactly 0.
    zero_mask = jnp.zeros((B, C, H, W), bool)
    got0 = jax.block_until_ready(silog_loss(pred3, gt3, mask=zero_mask))
    assert abs(float(got0)) < 1e-6, float(got0)

    # 5) interpolate path: low-res prediction resized (bilinear, align_corners)
    #    to the target; mask at target resolution.
    pred_lo = jax.random.uniform(ks[9], (2, 1, 8, 8), jnp.float32, 0.1, 10.0)
    gt_hi = jax.random.uniform(ks[10], (2, 1, 16, 16), jnp.float32, 0.1, 10.0)
    mask_hi = jax.random.uniform(ks[11], (2, 1, 16, 16)) > 0.4
    check(pred_lo, gt_hi, mask_hi, label="interp/mask")

    print("KERNEL_OK")
</pallas_src>

<mosaic_0001>
module attributes {stable_mosaic.version = 11 : i64} {
  func.func @_silog_partials_kernel(%arg0: i32, %arg1: i32, %arg2: memref<8x128xf32, #tpu.memory_space<vmem>>, %arg3: memref<8x128xf32, #tpu.memory_space<vmem>>, %arg4: memref<1x2x8x128xf32, #tpu.memory_space<vmem>>) attributes {dimension_semantics = [#tpu.dimension_semantics<arbitrary>, #tpu.dimension_semantics<arbitrary>], iteration_bounds = array<i64: 1, 1>, scalar_prefetch = 0 : i64, scratch_operands = 0 : i64, tpu.core_type = #tpu.core_type<tc>, window_params = [{transform_indices = @transform_0, window_bounds = array<i64: 8, 128>}, {transform_indices = @transform_1, window_bounds = array<i64: 8, 128>}, {transform_indices = @transform_2, window_bounds = array<i64: 1, 2, 8, 128>}]} {
    %c0_i32 = arith.constant 0 : i32
    %0 = arith.cmpi eq, %arg1, %c0_i32 : i32
    %1 = arith.extui %0 : i1 to i32
    %c0_i32_0 = arith.constant 0 : i32
    %2 = arith.cmpi ne, %1, %c0_i32_0 : i32
    scf.if %2 {
      %cst = arith.constant 0.000000e+00 : f32
      %13 = vector.broadcast %cst : f32 to vector<1x2x8x128xf32>
      %c0 = arith.constant 0 : index
      %c0_4 = arith.constant 0 : index
      %c0_5 = arith.constant 0 : index
      %c0_6 = arith.constant 0 : index
      %14 = vector.load %arg4[%c0, %c0_4, %c0_5, %c0_6] : memref<1x2x8x128xf32, #tpu.memory_space<vmem>>, vector<1x2x8x128xf32>
      tpu.vector_store %arg4[%c0, %c0_4, %c0_5, %c0_6], %13 {strides = array<i32>} : memref<1x2x8x128xf32, #tpu.memory_space<vmem>>, vector<1x2x8x128xf32>,
    } else {
    }
    %c1_i32 = arith.constant 1 : i32
    %3 = arith.muli %arg0, %c1_i32 : i32
    %4 = arith.addi %3, %arg1 : i32
    %c1_i32_1 = arith.constant 1 : i32
    %5 = arith.addi %4, %c1_i32_1 : i32
    %c1024_i32 = arith.constant 1024 : i32
    %6 = arith.muli %5, %c1024_i32 : i32
    %c512_i32 = arith.constant 512 : i32
    %7 = arith.cmpi sle, %6, %c512_i32 : i32
    %8 = arith.extui %7 : i1 to i32
    %c0_i32_2 = arith.constant 0 : i32
    %9 = arith.cmpi ne, %8, %c0_i32_2 : i32
    scf.if %9 {
      %c0 = arith.constant 0 : index
      %c0_4 = arith.constant 0 : index
      %13 = vector.load %arg2[%c0, %c0_4] : memref<8x128xf32, #tpu.memory_space<vmem>>, vector<8x128xf32>
      %cst = arith.constant 1.000000e-07 : f32
      %14 = vector.broadcast %cst : f32 to vector<8x128xf32>
      %15 = arith.maximumf %13, %14 : vector<8x128xf32>
      %c0_5 = arith.constant 0 : index
      %c0_6 = arith.constant 0 : index
      %16 = vector.load %arg3[%c0_5, %c0_6] : memref<8x128xf32, #tpu.memory_space<vmem>>, vector<8x128xf32>
      %cst_7 = arith.constant 1.000000e-07 : f32
      %17 = vector.broadcast %cst_7 : f32 to vector<8x128xf32>
      %18 = arith.maximumf %16, %17 : vector<8x128xf32>
      %19 = arith.divf %15, %18 : vector<8x128xf32>
      %20 = math.log %19 : vector<8x128xf32>
      %c0_8 = arith.constant 0 : index
      %c0_9 = arith.constant 0 : index
      %c0_10 = arith.constant 0 : index
      %c0_11 = arith.constant 0 : index
      %21 = vector.load %arg4[%c0_8, %c0_9, %c0_10, %c0_11] : memref<1x2x8x128xf32, #tpu.memory_space<vmem>>, vector<1x1x8x128xf32>
      %22 = vector.shape_cast %21 : vector<1x1x8x128xf32> to vector<8x128xf32>
      %23 = vector.shape_cast %20 : vector<8x128xf32> to vector<1x8x128xf32>
      %cst_12 = arith.constant dense<0.000000e+00> : vector<8x128xf32>
      %24 = vector.multi_reduction <add>, %23, %cst_12 [0] : vector<1x8x128xf32> to vector<8x128xf32>
      %25 = arith.addf %22, %24 : vector<8x128xf32>
      %c0_13 = arith.constant 0 : index
      %c0_14 = arith.constant 0 : index
      %c0_15 = arith.constant 0 : index
      %c0_16 = arith.constant 0 : index
      %26 = vector.load %arg4[%c0_13, %c0_14, %c0_15, %c0_16] : memref<1x2x8x128xf32, #tpu.memory_space<vmem>>, vector<1x1x8x128xf32>
      %27 = vector.shape_cast %26 : vector<1x1x8x128xf32> to vector<8x128xf32>
      %28 = vector.shape_cast %25 : vector<8x128xf32> to vector<1x1x8x128xf32>
      tpu.vector_store %arg4[%c0_13, %c0_14, %c0_15, %c0_16], %28 {strides = array<i32>} : memref<1x2x8x128xf32, #tpu.memory_space<vmem>>, vector<1x1x8x128xf32>,
      %c0_17 = arith.constant 0 : index
      %c1 = arith.constant 1 : index
      %c0_18 = arith.constant 0 : index
      %c0_19 = arith.constant 0 : index
      %29 = vector.load %arg4[%c0_17, %c1, %c0_18, %c0_19] : memref<1x2x8x128xf32, #tpu.memory_space<vmem>>, vector<1x1x8x128xf32>
      %30 = vector.shape_cast %29 : vector<1x1x8x128xf32> to vector<8x128xf32>
      %31 = arith.mulf %20, %20 : vector<8x128xf32>
      %32 = vector.shape_cast %31 : vector<8x128xf32> to vector<1x8x128xf32>
      %cst_20 = arith.constant dense<0.000000e+00> : vector<8x128xf32>
      %33 = vector.multi_reduction <add>, %32, %cst_20 [0] : vector<1x8x128xf32> to vector<8x128xf32>
      %34 = arith.addf %30, %33 : vector<8x128xf32>
      %c0_21 = arith.constant 0 : index
      %c1_22 = arith.constant 1 : index
      %c0_23 = arith.constant 0 : index
      %c0_24 = arith.constant 0 : index
      %35 = vector.load %arg4[%c0_21, %c1_22, %c0_23, %c0_24] : memref<1x2x8x128xf32, #tpu.memory_space<vmem>>, vector<1x1x8x128xf32>
      %36 = vector.shape_cast %35 : vector<1x1x8x128xf32> to vector<8x128xf32>
      %37 = vector.shape_cast %34 : vector<8x128xf32> to vector<1x1x8x128xf32>
      tpu.vector_store %arg4[%c0_21, %c1_22, %c0_23, %c0_24], %37 {strides = array<i32>} : memref<1x2x8x128xf32, #tpu.memory_space<vmem>>, vector<1x1x8x128xf32>,
    } else {
    }
    %true = arith.constant true
    %10 = arith.xori %7, %true : i1
    %11 = arith.extui %10 : i1 to i32
    %c0_i32_3 = arith.constant 0 : i32
    %12 = arith.cmpi ne, %11, %c0_i32_3 : i32
    scf.if %12 {
      %c1024_i32_4 = arith.constant 1024 : i32
      %13 = arith.muli %4, %c1024_i32_4 : i32
      %14 = tpu.iota {dimensions = array<i32: 0>} : vector<8x128xi32>
      %c128_i32 = arith.constant 128 : i32
      %15 = vector.broadcast %c128_i32 : i32 to vector<8x128xi32>
      %16 = arith.muli %14, %15 : vector<8x128xi32>
      %17 = vector.broadcast %13 : i32 to vector<8x128xi32>
      %18 = arith.addi %17, %16 : vector<8x128xi32>
      %19 = tpu.iota {dimensions = array<i32: 1>} : vector<8x128xi32>
      %20 = arith.addi %18, %19 : vector<8x128xi32>
      %c512_i32_5 = arith.constant 512 : i32
      %21 = vector.broadcast %c512_i32_5 : i32 to vector<8x128xi32>
      %22 = arith.cmpi slt, %20, %21 : vector<8x128xi32>
      %c0 = arith.constant 0 : index
      %c0_6 = arith.constant 0 : index
      %23 = vector.load %arg2[%c0, %c0_6] : memref<8x128xf32, #tpu.memory_space<vmem>>, vector<8x128xf32>
      %cst = arith.constant 1.000000e-07 : f32
      %24 = vector.broadcast %cst : f32 to vector<8x128xf32>
      %25 = arith.maximumf %23, %24 : vector<8x128xf32>
      %c0_7 = arith.constant 0 : index
      %c0_8 = arith.constant 0 : index
      %26 = vector.load %arg3[%c0_7, %c0_8] : memref<8x128xf32, #tpu.memory_space<vmem>>, vector<8x128xf32>
      %cst_9 = arith.constant 1.000000e-07 : f32
      %27 = vector.broadcast %cst_9 : f32 to vector<8x128xf32>
      %28 = arith.maximumf %26, %27 : vector<8x128xf32>
      %29 = arith.divf %25, %28 : vector<8x128xf32>
      %30 = math.log %29 : vector<8x128xf32>
      %cst_10 = arith.constant 0.000000e+00 : f32
      %31 = vector.broadcast %cst_10 : f32 to vector<8x128xf32>
      %32 = arith.select %22, %30, %31 : vector<8x128xi1>, vector<8x128xf32>
      %c0_11 = arith.constant 0 : index
      %c0_12 = arith.constant 0 : index
      %c0_13 = arith.constant 0 : index
      %c0_14 = arith.constant 0 : index
      %33 = vector.load %arg4[%c0_11, %c0_12, %c0_13, %c0_14] : memref<1x2x8x128xf32, #tpu.memory_space<vmem>>, vector<1x1x8x128xf32>
      %34 = vector.shape_cast %33 : vector<1x1x8x128xf32> to vector<8x128xf32>
      %35 = vector.shape_cast %32 : vector<8x128xf32> to vector<1x8x128xf32>
      %cst_15 = arith.constant dense<0.000000e+00> : vector<8x128xf32>
      %36 = vector.multi_reduction <add>, %35, %cst_15 [0] : vector<1x8x128xf32> to vector<8x128xf32>
      %37 = arith.addf %34, %36 : vector<8x128xf32>
      %c0_16 = arith.constant 0 : index
      %c0_17 = arith.constant 0 : index
      %c0_18 = arith.constant 0 : index
      %c0_19 = arith.constant 0 : index
      %38 = vector.load %arg4[%c0_16, %c0_17, %c0_18, %c0_19] : memref<1x2x8x128xf32, #tpu.memory_space<vmem>>, vector<1x1x8x128xf32>
      %39 = vector.shape_cast %38 : vector<1x1x8x128xf32> to vector<8x128xf32>
      %40 = vector.shape_cast %37 : vector<8x128xf32> to vector<1x1x8x128xf32>
      tpu.vector_store %arg4[%c0_16, %c0_17, %c0_18, %c0_19], %40 {strides = array<i32>} : memref<1x2x8x128xf32, #tpu.memory_space<vmem>>, vector<1x1x8x128xf32>,
      %c0_20 = arith.constant 0 : index
      %c1 = arith.constant 1 : index
      %c0_21 = arith.constant 0 : index
      %c0_22 = arith.constant 0 : index
      %41 = vector.load %arg4[%c0_20, %c1, %c0_21, %c0_22] : memref<1x2x8x128xf32, #tpu.memory_space<vmem>>, vector<1x1x8x128xf32>
      %42 = vector.shape_cast %41 : vector<1x1x8x128xf32> to vector<8x128xf32>
      %43 = arith.mulf %32, %32 : vector<8x128xf32>
      %44 = vector.shape_cast %43 : vector<8x128xf32> to vector<1x8x128xf32>
      %cst_23 = arith.constant dense<0.000000e+00> : vector<8x128xf32>
      %45 = vector.multi_reduction <add>, %44, %cst_23 [0] : vector<1x8x128xf32> to vector<8x128xf32>
      %46 = arith.addf %42, %45 : vector<8x128xf32>
      %c0_24 = arith.constant 0 : index
      %c1_25 = arith.constant 1 : index
      %c0_26 = arith.constant 0 : index
      %c0_27 = arith.constant 0 : index
      %47 = vector.load %arg4[%c0_24, %c1_25, %c0_26, %c0_27] : memref<1x2x8x128xf32, #tpu.memory_space<vmem>>, vector<1x1x8x128xf32>
      %48 = vector.shape_cast %47 : vector<1x1x8x128xf32> to vector<8x128xf32>
      %49 = vector.shape_cast %46 : vector<8x128xf32> to vector<1x1x8x128xf32>
      tpu.vector_store %arg4[%c0_24, %c1_25, %c0_26, %c0_27], %49 {strides = array<i32>} : memref<1x2x8x128xf32, #tpu.memory_space<vmem>>, vector<1x1x8x128xf32>,
    } else {
    }
    return
  }
  func.func @transform_0(%arg0: i32, %arg1: i32) -> (i32, i32) {
    %c1_i32 = arith.constant 1 : i32
    %0 = arith.muli %arg0, %c1_i32 : i32
    %1 = arith.addi %0, %arg1 : i32
    %c0_i32 = arith.constant 0 : i32
    %2 = arith.minsi %1, %c0_i32 : i32
    %c0_i32_0 = arith.constant 0 : i32
    %c0_i32_1 = arith.constant 0 : i32
    return %2, %c0_i32_0 : i32, i32
  }
  func.func @transform_1(%arg0: i32, %arg1: i32) -> (i32, i32) {
    %c1_i32 = arith.constant 1 : i32
    %0 = arith.muli %arg0, %c1_i32 : i32
    %1 = arith.addi %0, %arg1 : i32
    %c0_i32 = arith.constant 0 : i32
    %2 = arith.minsi %1, %c0_i32 : i32
    %c0_i32_0 = arith.constant 0 : i32
    %c0_i32_1 = arith.constant 0 : i32
    return %2, %c0_i32_0 : i32, i32
  }
  func.func @transform_2(%arg0: i32, %arg1: i32) -> (i32, i32, i32, i32) {
    %c0_i32 = arith.constant 0 : i32
    %c0_i32_0 = arith.constant 0 : i32
    %c0_i32_1 = arith.constant 0 : i32
    %c0_i32_2 = arith.constant 0 : i32
    return %arg0, %c0_i32, %c0_i32_0, %c0_i32_1 : i32, i32, i32, i32
  }
}

</mosaic_0001>

<llo_original>
// kernel: tpu_custom_call.1
$region0: #{tpu_custom_call.1}
  #allocation0 [shape = 'u32[]', space=smem, size = 0x4, offset = 0x4, fixed_abs, tag = 'smem constant byte address 0x4 - core index']
  #allocation1 [shape = 'u32[144,128]{1,0:T(1,128)}', space=vmem, size = 0x12000, scoped, tag = 'internal scratch']
  %s0 = inlined_call_operand.hbm [shape: f32[8,128], index: 0, kind: input, shape index: {}]
  %s1 = inlined_call_operand.hbm [shape: f32[8,128], index: 1, kind: input, shape index: {}]
  %s2 = inlined_call_operand.hbm [shape: f32[1,2,8,128], index: 2, kind: output, shape index: {}]
  %s3 = sld [smem:[#allocation0]]
  $region38: #{tpu_custom_call.1} parent=0
    _
  %s5 = ssub.s32 1, %s3
  %s6 = scalar_select 0, %s5, %s3
  $region1: #{tpu_custom_call.1} parent=0
    #allocation2 [shape = 'u8[4096]{0}', space=vmem, size = 0x1000, scoped, tag = 'input window, operand 0, single buffered']
    #allocation3 [shape = 's32[1]{0}', space=sflag, size = 0x4, scoped, tag = 'scoped memory for tpu_custom_call.1']
    #allocation4 [shape = 's32[1]{0}', space=sflag, size = 0x4, scoped, tag = 'scoped memory for tpu_custom_call.1']
    #allocation5 [shape = 'u8[4096]{0}', space=vmem, size = 0x1000, scoped, tag = 'input window, operand 1, single buffered']
    #allocation6 [shape = 's32[1]{0}', space=sflag, size = 0x4, scoped, tag = 'scoped memory for tpu_custom_call.1']
    #allocation7 [shape = 'u8[8192]{0}', space=vmem, size = 0x2000, scoped, tag = 'output window, operand 0, single buffered']
    %7 = vsyncpa [#allocation3], 0
    %8 = vsyncpa [#allocation6], 0
    %9 = vsyncpa [#allocation4], 0
    // Predicated region
    $region2: #{tpu_custom_call.1} parent=1 // pred_check
      _
    $region3: #{tpu_custom_call.1} parent=1 // pred_check_branch
      %11 = sbr.rel (0) target = $region5
    $region4: #{tpu_custom_call.1} parent=1 // pred_region
      %s12 = sadd.s32 0, 0
      %p13 = scmp.lt.s32.totalorder %s12, 0
      %s14 = scalar_select %p13, %s12, 0
      %s16 = ssub.s32 128, 128
      %17 = vsyncadd [#allocation3], %s16
      %s18 = smul.addr %s14, 128
      %s19 = scalar_lea.hbm %s0, %s18
      %s21 = sshll.u32 [#allocation2], 4
      %s22 = int_to_ptr.vmem [resolvable:$true] %s21
      %24 = dma.hbm_to_vmem [thread:$0]  %s19, 128, %s22, [#allocation3]
    $region5: #{tpu_custom_call.1} parent=1 // pred_fallthru
      _
    // Predicated region
    $region6: #{tpu_custom_call.1} parent=1 // pred_check
      _
    $region7: #{tpu_custom_call.1} parent=1 // pred_check_branch
      %26 = sbr.rel (0) target = $region9
    $region8: #{tpu_custom_call.1} parent=1 // pred_region
      %s27 = sadd.s32 0, 0
      %p28 = scmp.lt.s32.totalorder %s27, 0
      %s29 = scalar_select %p28, %s27, 0
      %s31 = ssub.s32 128, 128
      %32 = vsyncadd [#allocation6], %s31
      %s33 = smul.addr %s29, 128
      %s34 = scalar_lea.hbm %s1, %s33
      %s36 = sshll.u32 [#allocation5], 4
      %s37 = int_to_ptr.vmem [resolvable:$true] %s36
      %39 = dma.hbm_to_vmem [thread:$0]  %s34, 128, %s37, [#allocation6]
    $region9: #{tpu_custom_call.1} parent=1 // pred_fallthru
      _
    // Predicated region
    $region10: #{tpu_custom_call.1} parent=1 // pred_check
      _
    $region11: #{tpu_custom_call.1} parent=1 // pred_check_branch
      %41 = sbr.rel (0) target = $region13
    $region12: #{tpu_custom_call.1} parent=1 // pred_region
      %42 = dma.done [#allocation3], 128
    $region13: #{tpu_custom_call.1} parent=1 // pred_fallthru
      _
    // Predicated region
    $region14: #{tpu_custom_call.1} parent=1 // pred_check
      _
    $region15: #{tpu_custom_call.1} parent=1 // pred_check_branch
      %44 = sbr.rel (0) target = $region17
    $region16: #{tpu_custom_call.1} parent=1 // pred_region
      %45 = dma.done [#allocation6], 128
    $region17: #{tpu_custom_call.1} parent=1 // pred_fallthru
      _
    %s46 = sadd.s32 0, 0
    %p47 = scmp.lt.s32.totalorder %s46, 0
    %s48 = scalar_select %p47, %s46, 0
    %s49 = sadd.s32 0, 0
    %p50 = scmp.lt.s32.totalorder %s49, 0
    %s51 = scalar_select %p50, %s49, 0
    %p52 = scmp.eq.s32.totalorder 0, 0
    // Predicated region
    $region18: #{tpu_custom_call.1} parent=1 // pred_check
      %p53 = pneg %p52
    $region19: #{tpu_custom_call.1} parent=1 // pred_check_branch
      %55 = sbr.rel (%p53) target = $region21
    $region20: #{tpu_custom_call.1} parent=1 // pred_region
      %56 = vst [vmem:[#allocation7] sm:$0xff] 0.0
      %57 = vst [vmem:[#allocation7 + $0x8] sm:$0xff] 0.0
    $region21: #{tpu_custom_call.1} parent=1 // pred_fallthru
      _
    %s58 = sadd.s32 0, 0
    %s59 = sadd.s32 %s58, 1
    %s60 = smul.u32 %s59, 1024
    %p61 = scmp.le.s32.totalorder %s60, 512
    // Predicated region
    $region22: #{tpu_custom_call.1} parent=1 // pred_check
      %p62 = pneg %p61
    $region23: #{tpu_custom_call.1} parent=1 // pred_check_branch
      %64 = sbr.rel (%p62) target = $region25
    $region24: #{tpu_custom_call.1} parent=1 // pred_region
      %v65 = vld [vmem:[#allocation2] sm:$0xff]
      %v66 = vmax.f32 %v65, 1e-07
      %v67 = vld [vmem:[#allocation5] sm:$0xff]
      %v68 = vmax.f32 %v67, 1e-07
      %v69 = vrcp.pop %v68
      %v70 = vmul.f32 %v66, %v69
      %v71 = vlog2.pop %v70
      %v72 = vmul.f32 %v71, 0.6931472
      %v73 = vld [vmem:[#allocation7] sm:$0xff]
      %v74 = vadd.f32 %v72, 0.0
      %v75 = vadd.f32 %v73, %v74
      %76 = vst [vmem:[#allocation7] sm:$0xff] %v75
      %s77 = scalar_lea.vmem [#allocation7], 8
      %v78 = vld [vmem:[%s77] sm:$0xff]
      %v79 = vmul.f32 %v72, %v72
      %v80 = vadd.f32 %v79, 0.0
      %v81 = vadd.f32 %v78, %v80
      %82 = vst [vmem:[%s77] sm:$0xff] %v81
    $region25: #{tpu_custom_call.1} parent=1 // pred_fallthru
      _
    %p83 = scmp.gt.s32.totalorder %s60, 512
    // Predicated region
    $region26: #{tpu_custom_call.1} parent=1 // pred_check
      %p84 = pneg %p83
    $region27: #{tpu_custom_call.1} parent=1 // pred_check_branch
      %86 = sbr.rel (%p84) target = $region29
    $region28: #{tpu_custom_call.1} parent=1 // pred_region
      %s87 = smul.u32 %s58, 1024
      %v88 = vlaneseq
      %v89 = vshrl.u32 %v88, 7
      %v90 = vmul.u32 %v89, 128
      %v91 = vstv %s87
      %v92 = vadd.s32 %v91, %v90
      %v93 = vlaneseq
      %v94 = vand.u32 %v93, 127
      %v95 = vadd.s32 %v92, %v94
      %vm96 = vcmp.lt.s32.totalorder %v95, 512
      %v97 = vld [vmem:[#allocation2] sm:$0xff]
      %v98 = vmax.f32 %v97, 1e-07
      %v99 = vld [vmem:[#allocation5] sm:$0xff]
      %v100 = vmax.f32 %v99, 1e-07
      %v101 = vrcp.pop %v100
      %v102 = vmul.f32 %v98, %v101
      %v103 = vlog2.pop %v102
      %v104 = vmul.f32 %v103, 0.6931472
      %v105 = vsel %vm96, %v104, 0.0
      %v106 = vld [vmem:[#allocation7] sm:$0xff]
      %v107 = vadd.f32 %v105, 0.0
      %v108 = vadd.f32 %v106, %v107
      %109 = vst [vmem:[#allocation7] sm:$0xff] %v108
      %s110 = scalar_lea.vmem [#allocation7], 8
      %v111 = vld [vmem:[%s110] sm:$0xff]
      %v112 = vmul.f32 %v105, %v105
      %v113 = vadd.f32 %v112, 0.0
      %v114 = vadd.f32 %v111, %v113
      %115 = vst [vmem:[%s110] sm:$0xff] %v114
    $region29: #{tpu_custom_call.1} parent=1 // pred_fallthru
      _
    // Predicated region
    $region30: #{tpu_custom_call.1} parent=1 // pred_check
      _
    $region31: #{tpu_custom_call.1} parent=1 // pred_check_branch
      %117 = sbr.rel (0) target = $region33
    $region32: #{tpu_custom_call.1} parent=1 // pred_region
      %s119 = ssub.s32 256, 256
      %120 = vsyncadd [#allocation4], %s119
      %s121 = sshll.u32 [#allocation7], 4
      %s122 = int_to_ptr.vmem [resolvable:$true] %s121
      %127 = dma.vmem_to_hbm [thread:$0]  %s122, 256, %s2, [#allocation4], 128, 128, 8
    $region33: #{tpu_custom_call.1} parent=1 // pred_fallthru
      _
    // Predicated region
    $region34: #{tpu_custom_call.1} parent=1 // pred_check
      _
    $region35: #{tpu_custom_call.1} parent=1 // pred_check_branch
      %129 = sbr.rel (0) target = $region37
    $region36: #{tpu_custom_call.1} parent=1 // pred_region
      %130 = dma.done [#allocation4], 256
    $region37: #{tpu_custom_call.1} parent=1 // pred_fallthru
      _
    %131 = vsyncpa [#allocation3], 1
    %132 = vsyncpa [#allocation6], 1
    %133 = vsyncpa [#allocation4], 1

</llo_original>
